<compile_context>
chip_gen: v7x
topology: tpu7x:2x2x1
jax: 0.10.0
libtpu: 0.0.40
codegen_flags: <defaults>
</compile_context>

<pallas_src>
import functools

import jax
import jax.numpy as jnp
from jax.experimental import pallas as pl
from jax.experimental.pallas import tpu as pltpu


def _temporal_block_kernel(x_ref, w1_ref, b1_ref, w2_ref, b2_ref, wd_ref, bd_ref,
                           o_ref, xwin_ref, h1win_ref, col1_ref, col2_ref,
                           *, kk, dilation, pad, tl, use_downsample, compute_dtype):
    """One (batch, L-tile) grid step.

    x_ref     : (1, Cin, TL)     current input tile (compute_dtype)
    w1_ref    : (Cout, K*Cin)    conv1 weight, taps stacked on contraction dim
    w2_ref    : (Cout, K*Cout)   conv2 weight, taps stacked on contraction dim
    wd_ref    : (Cout, Cin)      1x1 downsample weight (ignored if identity res)
    b*_ref    : (Cout, 1)        float32 biases
    o_ref     : (1, Cout, TL)
    xwin_ref  : (Cin,  pad+TL)   persistent: causal halo + current x tile
    h1win_ref : (Cout, pad+TL)   persistent: causal halo + current h1 tile
    col1_ref  : (K*Cin,  TL)     im2col scratch for conv1
    col2_ref  : (K*Cout, TL)     im2col scratch for conv2
    """
    l = pl.program_id(1)
    cin = x_ref.shape[1]
    cout = o_ref.shape[1]

    # Zero the causal halo at the first L-tile of every batch element.
    if pad > 0:
        @pl.when(l == 0)
        def _init_halo():
            xwin_ref[:, :pad] = jnp.zeros((cin, pad), compute_dtype)
            h1win_ref[:, :pad] = jnp.zeros((cout, pad), compute_dtype)

    x_blk = x_ref[0]                                   # (Cin, TL)
    xwin_ref[:, pad:] = x_blk

    # ---- conv1 + chomp1 : causal dilated conv as ONE fused MXU matmul ----
    for k in range(kk):                                # static im2col unroll
        col1_ref[k * cin:(k + 1) * cin, :] = (
            xwin_ref[:, k * dilation:k * dilation + tl])
    h1 = jnp.dot(w1_ref[...], col1_ref[...], preferred_element_type=jnp.float32)
    h1 = jnp.maximum(h1 + b1_ref[...], 0.0)            # ReLU; dropout = identity (eval)
    h1win_ref[:, pad:] = h1.astype(compute_dtype)

    # ---- conv2 + chomp2 ----
    for k in range(kk):
        col2_ref[k * cout:(k + 1) * cout, :] = (
            h1win_ref[:, k * dilation:k * dilation + tl])
    h2 = jnp.dot(w2_ref[...], col2_ref[...], preferred_element_type=jnp.float32)
    h2 = jnp.maximum(h2 + b2_ref[...], 0.0)            # ReLU; dropout = identity (eval)

    # ---- residual branch ----
    if use_downsample:
        res = jnp.dot(wd_ref[...], x_blk,
                      preferred_element_type=jnp.float32) + bd_ref[...]
    else:
        res = x_blk.astype(jnp.float32)

    o_ref[0] = jnp.maximum(h2 + res, 0.0).astype(o_ref.dtype)   # final ReLU

    # ---- carry the causal halo (last `pad` columns) to the next L-tile ----
    if pad > 0:
        xwin_ref[:, :pad] = xwin_ref[:, tl:tl + pad]
        h1win_ref[:, :pad] = h1win_ref[:, tl:tl + pad]


def _choose_tile_l(L, pad):
    """Largest lane-dense tile (multiple of 128) dividing L and covering the halo."""
    for cand in (1024, 512, 256, 128):
        if L % cand == 0 and cand >= pad:
            return cand
    return L


def temporal_block(x, params, *, kernel_size, dilation,
                   compute_dtype=jnp.float32, tile_l=None):
    """TemporalBlock forward pass (eval mode). x: (N, Cin, L) -> (N, Cout, L)."""
    N, Cin, L = x.shape
    w1, b1, w2, b2 = params["w1"], params["b1"], params["w2"], params["b2"]
    Cout = w1.shape[0]
    K = kernel_size
    pad = (K - 1) * dilation
    use_downsample = Cin != Cout
    wd = params.get("wd", jnp.zeros((Cout, Cin), x.dtype))
    bd = params.get("bd", jnp.zeros((Cout, 1), x.dtype))

    if tile_l is None:
        tile_l = _choose_tile_l(L, pad)
    assert L % tile_l == 0, "tile_l must divide L"
    assert tile_l == L or tile_l >= pad, "tile_l must cover the causal halo"
    n_l = L // tile_l

    cdt = compute_dtype
    # Stack the K taps along the contraction dim -> one matmul per conv.
    w1r = jnp.transpose(w1, (0, 2, 1)).reshape(Cout, K * Cin).astype(cdt)
    w2r = jnp.transpose(w2, (0, 2, 1)).reshape(Cout, K * Cout).astype(cdt)
    wdc = wd.astype(cdt)
    xc = x.astype(cdt)
    b1f = b1.astype(jnp.float32)
    b2f = b2.astype(jnp.float32)
    bdf = bd.astype(jnp.float32)

    # Rough VMEM budget: double-buffered pipeline blocks + persistent scratch.
    eb = jnp.dtype(cdt).itemsize
    est = (2 * Cin * tile_l * eb                       # x tile (x2 buffers)
           + 2 * Cout * tile_l * 4                     # out tile (x2 buffers, f32)
           + (Cin + Cout) * (pad + tile_l) * eb        # halo windows
           + K * (Cin + Cout) * tile_l * eb            # im2col scratch
           + 2 * (K * Cin * Cout + K * Cout * Cout + Cin * Cout) * eb  # weights
           + 2 * 3 * Cout * 4)                         # biases
    vmem_limit = int(min(64 * 2**20, max(32 * 2**20, 2 * est)))

    kernel = functools.partial(
        _temporal_block_kernel, kk=K, dilation=dilation, pad=pad, tl=tile_l,
        use_downsample=use_downsample, compute_dtype=cdt)

    return pl.pallas_call(
        kernel,
        out_shape=jax.ShapeDtypeStruct((N, Cout, L), x.dtype),
        grid_spec=pltpu.PrefetchScalarGridSpec(
            num_scalar_prefetch=0,
            grid=(N, n_l),
            in_specs=[
                pl.BlockSpec((1, Cin, tile_l), lambda b, l: (b, 0, l)),
                pl.BlockSpec((Cout, K * Cin), lambda b, l: (0, 0)),
                pl.BlockSpec((Cout, 1), lambda b, l: (0, 0)),
                pl.BlockSpec((Cout, K * Cout), lambda b, l: (0, 0)),
                pl.BlockSpec((Cout, 1), lambda b, l: (0, 0)),
                pl.BlockSpec((Cout, Cin), lambda b, l: (0, 0)),
                pl.BlockSpec((Cout, 1), lambda b, l: (0, 0)),
            ],
            out_specs=pl.BlockSpec((1, Cout, tile_l), lambda b, l: (b, 0, l)),
            scratch_shapes=[
                pltpu.VMEM((Cin, pad + tile_l), cdt),      # x window (halo carry)
                pltpu.VMEM((Cout, pad + tile_l), cdt),     # h1 window (halo carry)
                pltpu.VMEM((K * Cin, tile_l), cdt),        # im2col for conv1
                pltpu.VMEM((K * Cout, tile_l), cdt),       # im2col for conv2
            ]),
        compiler_params=pltpu.CompilerParams(
            dimension_semantics=("parallel", "arbitrary"),
            vmem_limit_bytes=vmem_limit),
    )(xc, w1r, b1f, w2r, b2f, wdc, bdf)


def init_params(key, in_channels, out_channels, kernel_size):
    """Deterministic parameter init matching nn.Conv1d shapes."""
    k = jax.random.split(key, 6)
    w1 = 0.1 * jax.random.normal(k[0], (out_channels, in_channels, kernel_size),
                                 jnp.float32)
    b1 = 0.1 * jax.random.normal(k[1], (out_channels, 1), jnp.float32)
    w2 = 0.1 * jax.random.normal(k[2], (out_channels, out_channels, kernel_size),
                                 jnp.float32)
    b2 = 0.1 * jax.random.normal(k[3], (out_channels, 1), jnp.float32)
    wd = 0.1 * jax.random.normal(k[4], (out_channels, in_channels), jnp.float32)
    bd = 0.1 * jax.random.normal(k[5], (out_channels, 1), jnp.float32)
    return dict(w1=w1, b1=b1, w2=w2, b2=b2, wd=wd, bd=bd)


def temporal_block_ref(x, params, *, kernel_size, dilation,
                       compute_dtype=jnp.float32):
    """Pure-JAX reference (eval mode), mirroring the kernel's operand rounding."""
    f32 = jnp.float32
    K, d = kernel_size, dilation
    p = (K - 1) * d
    N, Cin, L = x.shape
    Cout = params["w1"].shape[0]
    xc = x.astype(compute_dtype).astype(f32)
    w1 = params["w1"].astype(compute_dtype).astype(f32)
    w2 = params["w2"].astype(compute_dtype).astype(f32)
    wd = params["wd"].astype(compute_dtype).astype(f32)
    xpad = jnp.pad(xc, ((0, 0), (0, 0), (p, 0)))
    h1 = jnp.zeros((N, Cout, L), f32)
    for k in range(K):
        h1 += jnp.einsum("oi,nil->nol", w1[:, :, k], xpad[:, :, k * d:k * d + L])
    h1 = jax.nn.relu(h1 + params["b1"][None].astype(f32))
    h1 = h1.astype(compute_dtype).astype(f32)
    h1p = jnp.pad(h1, ((0, 0), (0, 0), (p, 0)))
    h2 = jnp.zeros((N, Cout, L), f32)
    for k in range(K):
        h2 += jnp.einsum("oi,nil->nol", w2[:, :, k], h1p[:, :, k * d:k * d + L])
    h2 = jax.nn.relu(h2 + params["b2"][None].astype(f32))
    if Cin != Cout:
        res = jnp.einsum("oi,nil->nol", wd, xc) + params["bd"][None].astype(f32)
    else:
        res = xc
    return jax.nn.relu(h2 + res)


if __name__ == "__main__":
    key = jax.random.PRNGKey(0)

    # --- test 1: tiny shapes, f32, downsample residual, single L-tile ---
    N, Cin, Cout, L = 2, 4, 8, 16
    K, d = 3, 2                                  # padding = 4, stride = 1
    k1, k2, key = jax.random.split(key, 3)
    x = jax.random.normal(k1, (N, Cin, L), jnp.float32)
    params = init_params(k2, Cin, Cout, K)
    out = jax.block_until_ready(
        temporal_block(x, params, kernel_size=K, dilation=d))
    ref = temporal_block_ref(x, params, kernel_size=K, dilation=d)
    assert out.shape == (N, Cout, L)
    assert float(jnp.max(jnp.abs(out - ref))) < 1e-4

    # --- test 2: L-tiled (halo carry across tiles), bf16 operands, identity res ---
    N2, C2, L2 = 2, 32, 1024
    K2, d2 = 3, 8                                # padding = 16
    k3, k4, key = jax.random.split(key, 3)
    x2 = jax.random.normal(k3, (N2, C2, L2), jnp.float32)
    params2 = init_params(k4, C2, C2, K2)
    out2 = jax.block_until_ready(
        temporal_block(x2, params2, kernel_size=K2, dilation=d2,
                       compute_dtype=jnp.bfloat16, tile_l=256))
    ref2 = temporal_block_ref(x2, params2, kernel_size=K2, dilation=d2,
                              compute_dtype=jnp.bfloat16)
    assert out2.shape == (N2, C2, L2)
    assert float(jnp.max(jnp.abs(out2 - ref2))) < 2e-2

    print("KERNEL_OK")
</pallas_src>

<mosaic_0001>
module attributes {stable_mosaic.version = 11 : i64} {
  func.func @_temporal_block_kernel(%arg0: i32, %arg1: i32, %arg2: memref<1x4x16xf32, #tpu.memory_space<vmem>>, %arg3: memref<8x12xf32, #tpu.memory_space<vmem>>, %arg4: memref<8x1xf32, #tpu.memory_space<vmem>>, %arg5: memref<8x24xf32, #tpu.memory_space<vmem>>, %arg6: memref<8x1xf32, #tpu.memory_space<vmem>>, %arg7: memref<8x4xf32, #tpu.memory_space<vmem>>, %arg8: memref<8x1xf32, #tpu.memory_space<vmem>>, %arg9: memref<1x8x16xf32, #tpu.memory_space<vmem>>, %arg10: memref<4x20xf32, #tpu.memory_space<vmem>>, %arg11: memref<8x20xf32, #tpu.memory_space<vmem>>, %arg12: memref<12x16xf32, #tpu.memory_space<vmem>>, %arg13: memref<24x16xf32, #tpu.memory_space<vmem>>) attributes {dimension_semantics = [#tpu.dimension_semantics<parallel>, #tpu.dimension_semantics<arbitrary>], iteration_bounds = array<i64: 2, 1>, scalar_prefetch = 0 : i64, scratch_operands = 4 : i64, tpu.core_type = #tpu.core_type<tc>, window_params = [{transform_indices = @transform_0, window_bounds = array<i64: 1, 4, 16>}, {pipeline_mode = #tpu.pipeline_mode<synchronous>, transform_indices = @transform_1, window_bounds = array<i64: 8, 12>}, {pipeline_mode = #tpu.pipeline_mode<synchronous>, transform_indices = @transform_2, window_bounds = array<i64: 8, 1>}, {pipeline_mode = #tpu.pipeline_mode<synchronous>, transform_indices = @transform_3, window_bounds = array<i64: 8, 24>}, {pipeline_mode = #tpu.pipeline_mode<synchronous>, transform_indices = @transform_4, window_bounds = array<i64: 8, 1>}, {pipeline_mode = #tpu.pipeline_mode<synchronous>, transform_indices = @transform_5, window_bounds = array<i64: 8, 4>}, {pipeline_mode = #tpu.pipeline_mode<synchronous>, transform_indices = @transform_6, window_bounds = array<i64: 8, 1>}, {transform_indices = @transform_7, window_bounds = array<i64: 1, 8, 16>}]} {
    %c0_i32 = arith.constant 0 : i32
    %0 = arith.cmpi eq, %arg1, %c0_i32 : i32
    %1 = arith.extui %0 : i1 to i32
    %c0_i32_0 = arith.constant 0 : i32
    %2 = arith.cmpi ne, %1, %c0_i32_0 : i32
    scf.if %2 {
      %cst_59 = arith.constant 0.000000e+00 : f32
      %50 = vector.broadcast %cst_59 : f32 to vector<4x4xf32>
      %c0_60 = arith.constant 0 : index
      %c0_61 = arith.constant 0 : index
      %51 = vector.load %arg10[%c0_60, %c0_61] : memref<4x20xf32, #tpu.memory_space<vmem>>, vector<4x4xf32>
      tpu.vector_store %arg10[%c0_60, %c0_61], %50 {strides = array<i32>} : memref<4x20xf32, #tpu.memory_space<vmem>>, vector<4x4xf32>,
      %cst_62 = arith.constant 0.000000e+00 : f32
      %52 = vector.broadcast %cst_62 : f32 to vector<8x4xf32>
      %c0_63 = arith.constant 0 : index
      %c0_64 = arith.constant 0 : index
      %53 = vector.load %arg11[%c0_63, %c0_64] : memref<8x20xf32, #tpu.memory_space<vmem>>, vector<8x4xf32>
      tpu.vector_store %arg11[%c0_63, %c0_64], %52 {strides = array<i32>} : memref<8x20xf32, #tpu.memory_space<vmem>>, vector<8x4xf32>,
    } else {
    }
    %c0 = arith.constant 0 : index
    %c0_1 = arith.constant 0 : index
    %c0_2 = arith.constant 0 : index
    %3 = vector.load %arg2[%c0, %c0_1, %c0_2] : memref<1x4x16xf32, #tpu.memory_space<vmem>>, vector<1x4x16xf32>
    %4 = vector.shape_cast %3 : vector<1x4x16xf32> to vector<4x16xf32>
    %c0_3 = arith.constant 0 : index
    %c4 = arith.constant 4 : index
    %5 = vector.load %arg10[%c0_3, %c4] : memref<4x20xf32, #tpu.memory_space<vmem>>, vector<4x16xf32>
    tpu.vector_store %arg10[%c0_3, %c4], %4 {strides = array<i32>} : memref<4x20xf32, #tpu.memory_space<vmem>>, vector<4x16xf32>,
    %c0_4 = arith.constant 0 : index
    %c0_5 = arith.constant 0 : index
    %6 = vector.load %arg10[%c0_4, %c0_5] : memref<4x20xf32, #tpu.memory_space<vmem>>, vector<4x16xf32>
    %c0_6 = arith.constant 0 : index
    %c0_7 = arith.constant 0 : index
    %7 = vector.load %arg12[%c0_6, %c0_7] : memref<12x16xf32, #tpu.memory_space<vmem>>, vector<4x16xf32>
    tpu.vector_store %arg12[%c0_6, %c0_7], %6 {strides = array<i32>} : memref<12x16xf32, #tpu.memory_space<vmem>>, vector<4x16xf32>,
    %c0_8 = arith.constant 0 : index
    %c2 = arith.constant 2 : index
    %8 = vector.load %arg10[%c0_8, %c2] : memref<4x20xf32, #tpu.memory_space<vmem>>, vector<4x16xf32>
    %c4_9 = arith.constant 4 : index
    %c0_10 = arith.constant 0 : index
    %9 = vector.load %arg12[%c4_9, %c0_10] : memref<12x16xf32, #tpu.memory_space<vmem>>, vector<4x16xf32>
    tpu.vector_store %arg12[%c4_9, %c0_10], %8 {strides = array<i32>} : memref<12x16xf32, #tpu.memory_space<vmem>>, vector<4x16xf32>,
    %c0_11 = arith.constant 0 : index
    %c4_12 = arith.constant 4 : index
    %10 = vector.load %arg10[%c0_11, %c4_12] : memref<4x20xf32, #tpu.memory_space<vmem>>, vector<4x16xf32>
    %c8 = arith.constant 8 : index
    %c0_13 = arith.constant 0 : index
    %11 = vector.load %arg12[%c8, %c0_13] : memref<12x16xf32, #tpu.memory_space<vmem>>, vector<4x16xf32>
    tpu.vector_store %arg12[%c8, %c0_13], %10 {strides = array<i32>} : memref<12x16xf32, #tpu.memory_space<vmem>>, vector<4x16xf32>,
    %c0_14 = arith.constant 0 : index
    %c0_15 = arith.constant 0 : index
    %12 = vector.load %arg3[%c0_14, %c0_15] : memref<8x12xf32, #tpu.memory_space<vmem>>, vector<8x12xf32>
    %c0_16 = arith.constant 0 : index
    %c0_17 = arith.constant 0 : index
    %13 = vector.load %arg12[%c0_16, %c0_17] : memref<12x16xf32, #tpu.memory_space<vmem>>, vector<12x16xf32>
    %cst = arith.constant dense<0.000000e+00> : vector<8x16xf32>
    %14 = tpu.matmul %12, %13, %cst {dimension_numbers = #tpu.dot_dimension_numbers<[1], [0], [0], [1], [0, 0, 1, 1], [], []>} : vector<8x12xf32>, vector<12x16xf32>, vector<8x16xf32> -> vector<8x16xf32>
    %c0_18 = arith.constant 0 : index
    %c0_19 = arith.constant 0 : index
    %15 = vector.load %arg4[%c0_18, %c0_19] : memref<8x1xf32, #tpu.memory_space<vmem>>, vector<8x1xf32>
    %16 = vector.broadcast %15 : vector<8x1xf32> to vector<8x16xf32>
    %17 = arith.addf %14, %16 : vector<8x16xf32>
    %cst_20 = arith.constant 0.000000e+00 : f32
    %18 = vector.broadcast %cst_20 : f32 to vector<8x16xf32>
    %19 = arith.maximumf %17, %18 : vector<8x16xf32>
    %c0_21 = arith.constant 0 : index
    %c4_22 = arith.constant 4 : index
    %20 = vector.load %arg11[%c0_21, %c4_22] : memref<8x20xf32, #tpu.memory_space<vmem>>, vector<8x16xf32>
    tpu.vector_store %arg11[%c0_21, %c4_22], %19 {strides = array<i32>} : memref<8x20xf32, #tpu.memory_space<vmem>>, vector<8x16xf32>,
    %c0_23 = arith.constant 0 : index
    %c0_24 = arith.constant 0 : index
    %21 = vector.load %arg11[%c0_23, %c0_24] : memref<8x20xf32, #tpu.memory_space<vmem>>, vector<8x16xf32>
    %c0_25 = arith.constant 0 : index
    %c0_26 = arith.constant 0 : index
    %22 = vector.load %arg13[%c0_25, %c0_26] : memref<24x16xf32, #tpu.memory_space<vmem>>, vector<8x16xf32>
    tpu.vector_store %arg13[%c0_25, %c0_26], %21 {strides = array<i32>} : memref<24x16xf32, #tpu.memory_space<vmem>>, vector<8x16xf32>,
    %c0_27 = arith.constant 0 : index
    %c2_28 = arith.constant 2 : index
    %23 = vector.load %arg11[%c0_27, %c2_28] : memref<8x20xf32, #tpu.memory_space<vmem>>, vector<8x16xf32>
    %c8_29 = arith.constant 8 : index
    %c0_30 = arith.constant 0 : index
    %24 = vector.load %arg13[%c8_29, %c0_30] : memref<24x16xf32, #tpu.memory_space<vmem>>, vector<8x16xf32>
    tpu.vector_store %arg13[%c8_29, %c0_30], %23 {strides = array<i32>} : memref<24x16xf32, #tpu.memory_space<vmem>>, vector<8x16xf32>,
    %c0_31 = arith.constant 0 : index
    %c4_32 = arith.constant 4 : index
    %25 = vector.load %arg11[%c0_31, %c4_32] : memref<8x20xf32, #tpu.memory_space<vmem>>, vector<8x16xf32>
    %c16 = arith.constant 16 : index
    %c0_33 = arith.constant 0 : index
    %26 = vector.load %arg13[%c16, %c0_33] : memref<24x16xf32, #tpu.memory_space<vmem>>, vector<8x16xf32>
    tpu.vector_store %arg13[%c16, %c0_33], %25 {strides = array<i32>} : memref<24x16xf32, #tpu.memory_space<vmem>>, vector<8x16xf32>,
    %c0_34 = arith.constant 0 : index
    %c0_35 = arith.constant 0 : index
    %27 = vector.load %arg5[%c0_34, %c0_35] : memref<8x24xf32, #tpu.memory_space<vmem>>, vector<8x24xf32>
    %c0_36 = arith.constant 0 : index
    %c0_37 = arith.constant 0 : index
    %28 = vector.load %arg13[%c0_36, %c0_37] : memref<24x16xf32, #tpu.memory_space<vmem>>, vector<24x16xf32>
    %cst_38 = arith.constant dense<0.000000e+00> : vector<8x16xf32>
    %29 = tpu.matmul %27, %28, %cst_38 {dimension_numbers = #tpu.dot_dimension_numbers<[1], [0], [0], [1], [0, 0, 1, 1], [], []>} : vector<8x24xf32>, vector<24x16xf32>, vector<8x16xf32> -> vector<8x16xf32>
    %c0_39 = arith.constant 0 : index
    %c0_40 = arith.constant 0 : index
    %30 = vector.load %arg6[%c0_39, %c0_40] : memref<8x1xf32, #tpu.memory_space<vmem>>, vector<8x1xf32>
    %31 = vector.broadcast %30 : vector<8x1xf32> to vector<8x16xf32>
    %32 = arith.addf %29, %31 : vector<8x16xf32>
    %cst_41 = arith.constant 0.000000e+00 : f32
    %33 = vector.broadcast %cst_41 : f32 to vector<8x16xf32>
    %34 = arith.maximumf %32, %33 : vector<8x16xf32>
    %c0_42 = arith.constant 0 : index
    %c0_43 = arith.constant 0 : index
    %35 = vector.load %arg7[%c0_42, %c0_43] : memref<8x4xf32, #tpu.memory_space<vmem>>, vector<8x4xf32>
    %cst_44 = arith.constant dense<0.000000e+00> : vector<8x16xf32>
    %36 = tpu.matmul %35, %4, %cst_44 {dimension_numbers = #tpu.dot_dimension_numbers<[1], [0], [0], [1], [0, 0, 1, 1], [], []>} : vector<8x4xf32>, vector<4x16xf32>, vector<8x16xf32> -> vector<8x16xf32>
    %c0_45 = arith.constant 0 : index
    %c0_46 = arith.constant 0 : index
    %37 = vector.load %arg8[%c0_45, %c0_46] : memref<8x1xf32, #tpu.memory_space<vmem>>, vector<8x1xf32>
    %38 = vector.broadcast %37 : vector<8x1xf32> to vector<8x16xf32>
    %39 = arith.addf %36, %38 : vector<8x16xf32>
    %40 = arith.addf %34, %39 : vector<8x16xf32>
    %cst_47 = arith.constant 0.000000e+00 : f32
    %41 = vector.broadcast %cst_47 : f32 to vector<8x16xf32>
    %42 = arith.maximumf %40, %41 : vector<8x16xf32>
    %c0_48 = arith.constant 0 : index
    %c0_49 = arith.constant 0 : index
    %c0_50 = arith.constant 0 : index
    %43 = vector.load %arg9[%c0_48, %c0_49, %c0_50] : memref<1x8x16xf32, #tpu.memory_space<vmem>>, vector<1x8x16xf32>
    %44 = vector.shape_cast %43 : vector<1x8x16xf32> to vector<8x16xf32>
    %45 = vector.shape_cast %42 : vector<8x16xf32> to vector<1x8x16xf32>
    tpu.vector_store %arg9[%c0_48, %c0_49, %c0_50], %45 {strides = array<i32>} : memref<1x8x16xf32, #tpu.memory_space<vmem>>, vector<1x8x16xf32>,
    %c0_51 = arith.constant 0 : index
    %c16_52 = arith.constant 16 : index
    %46 = vector.load %arg10[%c0_51, %c16_52] : memref<4x20xf32, #tpu.memory_space<vmem>>, vector<4x4xf32>
    %c0_53 = arith.constant 0 : index
    %c0_54 = arith.constant 0 : index
    %47 = vector.load %arg10[%c0_53, %c0_54] : memref<4x20xf32, #tpu.memory_space<vmem>>, vector<4x4xf32>
    tpu.vector_store %arg10[%c0_53, %c0_54], %46 {strides = array<i32>} : memref<4x20xf32, #tpu.memory_space<vmem>>, vector<4x4xf32>,
    %c0_55 = arith.constant 0 : index
    %c16_56 = arith.constant 16 : index
    %48 = vector.load %arg11[%c0_55, %c16_56] : memref<8x20xf32, #tpu.memory_space<vmem>>, vector<8x4xf32>
    %c0_57 = arith.constant 0 : index
    %c0_58 = arith.constant 0 : index
    %49 = vector.load %arg11[%c0_57, %c0_58] : memref<8x20xf32, #tpu.memory_space<vmem>>, vector<8x4xf32>
    tpu.vector_store %arg11[%c0_57, %c0_58], %48 {strides = array<i32>} : memref<8x20xf32, #tpu.memory_space<vmem>>, vector<8x4xf32>,
    return
  }
  func.func @transform_0(%arg0: i32, %arg1: i32) -> (i32, i32, i32) {
    %c0_i32 = arith.constant 0 : i32
    %c0_i32_0 = arith.constant 0 : i32
    return %arg0, %c0_i32, %arg1 : i32, i32, i32
  }
  func.func @transform_1(%arg0: i32, %arg1: i32) -> (i32, i32) {
    %c0_i32 = arith.constant 0 : i32
    %c0_i32_0 = arith.constant 0 : i32
    %c0_i32_1 = arith.constant 0 : i32
    return %c0_i32, %c0_i32_0 : i32, i32
  }
  func.func @transform_2(%arg0: i32, %arg1: i32) -> (i32, i32) {
    %c0_i32 = arith.constant 0 : i32
    %c0_i32_0 = arith.constant 0 : i32
    %c0_i32_1 = arith.constant 0 : i32
    return %c0_i32, %c0_i32_0 : i32, i32
  }
  func.func @transform_3(%arg0: i32, %arg1: i32) -> (i32, i32) {
    %c0_i32 = arith.constant 0 : i32
    %c0_i32_0 = arith.constant 0 : i32
    %c0_i32_1 = arith.constant 0 : i32
    return %c0_i32, %c0_i32_0 : i32, i32
  }
  func.func @transform_4(%arg0: i32, %arg1: i32) -> (i32, i32) {
    %c0_i32 = arith.constant 0 : i32
    %c0_i32_0 = arith.constant 0 : i32
    %c0_i32_1 = arith.constant 0 : i32
    return %c0_i32, %c0_i32_0 : i32, i32
  }
  func.func @transform_5(%arg0: i32, %arg1: i32) -> (i32, i32) {
    %c0_i32 = arith.constant 0 : i32
    %c0_i32_0 = arith.constant 0 : i32
    %c0_i32_1 = arith.constant 0 : i32
    return %c0_i32, %c0_i32_0 : i32, i32
  }
  func.func @transform_6(%arg0: i32, %arg1: i32) -> (i32, i32) {
    %c0_i32 = arith.constant 0 : i32
    %c0_i32_0 = arith.constant 0 : i32
    %c0_i32_1 = arith.constant 0 : i32
    return %c0_i32, %c0_i32_0 : i32, i32
  }
  func.func @transform_7(%arg0: i32, %arg1: i32) -> (i32, i32, i32) {
    %c0_i32 = arith.constant 0 : i32
    %c0_i32_0 = arith.constant 0 : i32
    return %arg0, %c0_i32, %arg1 : i32, i32, i32
  }
}

</mosaic_0001>

<llo_original>
// kernel: tpu_custom_call.1
$region0: #{tpu_custom_call.1}
  #allocation0 [shape = 'u32[]', space=smem, size = 0x4, offset = 0x4, fixed_abs, tag = 'smem constant byte address 0x4 - core index']
  #allocation1 [shape = 'u32[144,128]{1,0:T(1,128)}', space=vmem, size = 0x12000, scoped, tag = 'internal scratch']
  #allocation2 [shape = 'f32[4,20]{1,0:T(4,128)}', space=vmem, size = 0x800, scoped, tag = 'scratch operand']
  #allocation3 [shape = 'f32[8,20]{1,0:T(8,128)}', space=vmem, size = 0x1000, scoped, tag = 'scratch operand']
  #allocation4 [shape = 'f32[12,16]{1,0:T(8,128)}', space=vmem, size = 0x2000, scoped, tag = 'scratch operand']
  #allocation5 [shape = 'f32[24,16]{1,0:T(8,128)}', space=vmem, size = 0x3000, scoped, tag = 'scratch operand']
  %s0 = inlined_call_operand.vmem [shape: f32[2,4,16], index: 0, kind: input, shape index: {}]
  %s1 = inlined_call_operand.vmem [shape: f32[8,12], index: 1, kind: input, shape index: {}]
  %s2 = inlined_call_operand.vmem [shape: f32[8,1], index: 2, kind: input, shape index: {}]
  %s3 = inlined_call_operand.vmem [shape: f32[8,24], index: 3, kind: input, shape index: {}]
  %s4 = inlined_call_operand.vmem [shape: f32[8,1], index: 4, kind: input, shape index: {}]
  %s5 = inlined_call_operand.vmem [shape: f32[8,4], index: 5, kind: input, shape index: {}]
  %s6 = inlined_call_operand.vmem [shape: f32[8,1], index: 6, kind: input, shape index: {}]
  %s7 = inlined_call_operand.hbm [shape: f32[2,8,16], index: 7, kind: output, shape index: {}]
  %s8 = sld [smem:[#allocation0]]
  $region65: #{tpu_custom_call.1} parent=0
    _
  %s10 = ssub.s32 1, %s8
  %s11 = scalar_select 0, %s10, %s8
  $region1: #{tpu_custom_call.1} parent=0
    #allocation6 [shape = 'u8[8192]{0}', space=vmem, size = 0x2000, scoped, tag = 'output window, operand 0']
    #allocation7 [shape = 's32[2]{0}', space=sflag, size = 0x8, scoped, tag = 'scoped memory for tpu_custom_call.1']
    %12 = vsyncpa [#allocation7], 0
    %s13 = scalar_lea.sflag [#allocation7], 1
    %14 = vsyncpa %s13, 0
    loop: start=0, step=1, limit=4
    $region2: #{tpu_custom_call.1} parent=1 // loop_pre_header
      _
    $region3: #{tpu_custom_call.1} parent=1 // loop_header
      %s16 = sphi 0, %s20
      %p17 = scmp.ge.s32.totalorder %s16, 4
      %s23 = sphi 0, %s35
      %s24 = sphi 0, %s31
      %s25 = sphi 0, %s23
      %s26 = sphi 0, %s24
      %s27 = sphi 0, %s25
      %s28 = sphi 0, %s26
      %s40 = sphi 0, %s42
      %s43 = sphi 0, %s40
      %s44 = sphi 0, %s43
      %s60 = sphi 0, %s44
      %s64 = sphi 0, %s64
      %s66 = sphi 0, %s64
      %s67 = sphi 0, %s66
      %s81 = sphi 0, %s67
      %s85 = sphi 0, %s85
      %s87 = sphi 0, %s85
      %s88 = sphi 0, %s87
      %s102 = sphi 0, %s88
      %s106 = sphi 0, %s106
      %s108 = sphi 0, %s106
      %s109 = sphi 0, %s108
      %s123 = sphi 0, %s109
      %s127 = sphi 0, %s127
      %s129 = sphi 0, %s127
      %s130 = sphi 0, %s129
      %s144 = sphi 0, %s130
      %s148 = sphi 0, %s148
      %s150 = sphi 0, %s148
      %s151 = sphi 0, %s150
      %s165 = sphi 0, %s151
      %s169 = sphi 0, %s169
      %s171 = sphi 0, %s169
      %s172 = sphi 0, %s171
      %s186 = sphi 0, %s172
      %s194 = sphi 0, %s196
      %s197 = sphi 0, %s194
      %s198 = sphi 0, %s197
      %s214 = sphi 0, %s198
    $region4: #{tpu_custom_call.1} parent=1 // loop_header_branch
      %19 = sbr.rel (%p17) target = $region8
    $region5: #{tpu_custom_call.1} parent=1 // loop_body
      %s21 = ssub.s32 %s16, 1
      %s22 = ssub.s32 %s16, 2
      %s29 = sadd.s32 1, %s24
      %p30 = scmp.ge.s32.totalorder %s29, 1
      %s31 = scalar_select %p30, 0, %s29
      %s32 = sadd.s32 1, %s23
      %s33 = scalar_select %p30, %s32, %s23
      %p34 = scmp.ge.s32.totalorder %s33, 2
      %s35 = scalar_select %p34, 0, %s33
      %s36 = ssub.s32 %s23, %s35
      %s37 = ssub.s32 %s24, %s31
      %s38 = sor.u32 %s36, %s37
      %p39 = scmp.eq.s32.totalorder %s38, 0
      %s41 = sadd.s32 %s40, 1
      %s42 = scalar_select %p39, %s40, %s41
      %p45 = pneg %p39
      %p46 = scmp.eq.s32.totalorder %s16, 1
      %p47 = por %p45, %p46
      %p48 = scmp.ne.s32.totalorder %s40, %s43
      %p49 = scmp.eq.s32.totalorder %s16, 0
      %p50 = por %p48, %p49
      %p51 = scmp.ne.s32.totalorder %s40, %s43
      %p52 = scmp.eq.s32.totalorder %s21, 1
      %p53 = por %p51, %p52
      %p54 = scmp.ne.s32.totalorder %s43, %s44
      %p55 = scmp.eq.s32.totalorder %s21, 0
      %p56 = por %p54, %p55
      %p57 = scmp.ne.s32.totalorder %s43, %s44
      %p58 = scmp.eq.s32.totalorder %s22, 1
      %p59 = por %p57, %p58
      %p61 = scmp.ne.s32.totalorder %s44, %s60
      %p62 = scmp.eq.s32.totalorder %s22, 0
      %p63 = por %p61, %p62
      %s65 = sadd.s32 %s64, 1
      %p68 = scmp.eq.s32.totalorder %s16, 1
      %p69 = scmp.ne.s32.totalorder %s64, %s66
      %p70 = scmp.eq.s32.totalorder %s16, 0
      %p71 = por %p69, %p70
      %p72 = scmp.ne.s32.totalorder %s64, %s66
      %p73 = scmp.eq.s32.totalorder %s21, 1
      %p74 = por %p72, %p73
      %p75 = scmp.ne.s32.totalorder %s66, %s67
      %p76 = scmp.eq.s32.totalorder %s21, 0
      %p77 = por %p75, %p76
      %p78 = scmp.ne.s32.totalorder %s66, %s67
      %p79 = scmp.eq.s32.totalorder %s22, 1
      %p80 = por %p78, %p79
      %p82 = scmp.ne.s32.totalorder %s67, %s81
      %p83 = scmp.eq.s32.totalorder %s22, 0
      %p84 = por %p82, %p83
      %s86 = sadd.s32 %s85, 1
      %p89 = scmp.eq.s32.totalorder %s16, 1
      %p90 = scmp.ne.s32.totalorder %s85, %s87
      %p91 = scmp.eq.s32.totalorder %s16, 0
      %p92 = por %p90, %p91
      %p93 = scmp.ne.s32.totalorder %s85, %s87
      %p94 = scmp.eq.s32.totalorder %s21, 1
      %p95 = por %p93, %p94
      %p96 = scmp.ne.s32.totalorder %s87, %s88
      %p97 = scmp.eq.s32.totalorder %s21, 0
      %p98 = por %p96, %p97
      %p99 = scmp.ne.s32.totalorder %s87, %s88
      %p100 = scmp.eq.s32.totalorder %s22, 1
      %p101 = por %p99, %p100
      %p103 = scmp.ne.s32.totalorder %s88, %s102
      %p104 = scmp.eq.s32.totalorder %s22, 0
      %p105 = por %p103, %p104
      %s107 = sadd.s32 %s106, 1
      %p110 = scmp.eq.s32.totalorder %s16, 1
      %p111 = scmp.ne.s32.totalorder %s106, %s108
      %p112 = scmp.eq.s32.totalorder %s16, 0
      %p113 = por %p111, %p112
      %p114 = scmp.ne.s32.totalorder %s106, %s108
      %p115 = scmp.eq.s32.totalorder %s21, 1
      %p116 = por %p114, %p115
      %p117 = scmp.ne.s32.totalorder %s108, %s109
      %p118 = scmp.eq.s32.totalorder %s21, 0
      %p119 = por %p117, %p118
      %p120 = scmp.ne.s32.totalorder %s108, %s109
      %p121 = scmp.eq.s32.totalorder %s22, 1
      %p122 = por %p120, %p121
      %p124 = scmp.ne.s32.totalorder %s109, %s123
      %p125 = scmp.eq.s32.totalorder %s22, 0
      %p126 = por %p124, %p125
      %s128 = sadd.s32 %s127, 1
      %p131 = scmp.eq.s32.totalorder %s16, 1
      %p132 = scmp.ne.s32.totalorder %s127, %s129
      %p133 = scmp.eq.s32.totalorder %s16, 0
      %p134 = por %p132, %p133
      %p135 = scmp.ne.s32.totalorder %s127, %s129
      %p136 = scmp.eq.s32.totalorder %s21, 1
      %p137 = por %p135, %p136
      %p138 = scmp.ne.s32.totalorder %s129, %s130
      %p139 = scmp.eq.s32.totalorder %s21, 0
      %p140 = por %p138, %p139
      %p141 = scmp.ne.s32.totalorder %s129, %s130
      %p142 = scmp.eq.s32.totalorder %s22, 1
      %p143 = por %p141, %p142
      %p145 = scmp.ne.s32.totalorder %s130, %s144
      %p146 = scmp.eq.s32.totalorder %s22, 0
      %p147 = por %p145, %p146
      %s149 = sadd.s32 %s148, 1
      %p152 = scmp.eq.s32.totalorder %s16, 1
      %p153 = scmp.ne.s32.totalorder %s148, %s150
      %p154 = scmp.eq.s32.totalorder %s16, 0
      %p155 = por %p153, %p154
      %p156 = scmp.ne.s32.totalorder %s148, %s150
      %p157 = scmp.eq.s32.totalorder %s21, 1
      %p158 = por %p156, %p157
      %p159 = scmp.ne.s32.totalorder %s150, %s151
      %p160 = scmp.eq.s32.totalorder %s21, 0
      %p161 = por %p159, %p160
      %p162 = scmp.ne.s32.totalorder %s150, %s151
      %p163 = scmp.eq.s32.totalorder %s22, 1
      %p164 = por %p162, %p163
      %p166 = scmp.ne.s32.totalorder %s151, %s165
      %p167 = scmp.eq.s32.totalorder %s22, 0
      %p168 = por %p166, %p167
      %s170 = sadd.s32 %s169, 1
      %p173 = scmp.eq.s32.totalorder %s16, 1
      %p174 = scmp.ne.s32.totalorder %s169, %s171
      %p175 = scmp.eq.s32.totalorder %s16, 0
      %p176 = por %p174, %p175
      %p177 = scmp.ne.s32.totalorder %s169, %s171
      %p178 = scmp.eq.s32.totalorder %s21, 1
      %p179 = por %p177, %p178
      %p180 = scmp.ne.s32.totalorder %s171, %s172
      %p181 = scmp.eq.s32.totalorder %s21, 0
      %p182 = por %p180, %p181
      %p183 = scmp.ne.s32.totalorder %s171, %s172
      %p184 = scmp.eq.s32.totalorder %s22, 1
      %p185 = por %p183, %p184
      %p187 = scmp.ne.s32.totalorder %s172, %s186
      %p188 = scmp.eq.s32.totalorder %s22, 0
      %p189 = por %p187, %p188
      %s190 = ssub.s32 %s23, %s35
      %s191 = ssub.s32 %s24, %s31
      %s192 = sor.u32 %s190, %s191
      %p193 = scmp.eq.s32.totalorder %s192, 0
      %s195 = sadd.s32 %s194, 1
      %s196 = scalar_select %p193, %s194, %s195
      %p199 = pneg %p193
      %p200 = scmp.eq.s32.totalorder %s16, 1
      %p201 = por %p199, %p200
      %p202 = scmp.ne.s32.totalorder %s194, %s197
      %p203 = scmp.eq.s32.totalorder %s16, 0
      %p204 = por %p202, %p203
      %p205 = scmp.ne.s32.totalorder %s194, %s197
      %p206 = scmp.eq.s32.totalorder %s21, 1
      %p207 = por %p205, %p206
      %p208 = scmp.ne.s32.totalorder %s197, %s198
      %p209 = scmp.eq.s32.totalorder %s21, 0
      %p210 = por %p208, %p209
      %p211 = scmp.ne.s32.totalorder %s197, %s198
      %p212 = scmp.eq.s32.totalorder %s22, 1
      %p213 = por %p211, %p212
      %p215 = scmp.ne.s32.totalorder %s198, %s214
      %p216 = scmp.eq.s32.totalorder %s22, 0
      %p217 = por %p215, %p216
      %p218 = scmp.le.s32.totalorder 1, %s16
      %p219 = scmp.lt.s32.totalorder %s16, 3
      %p220 = pnand %p218, %p219
      %p221 = pneg %p220
      // Predicated region
      $region9: #{tpu_custom_call.1} parent=5 // pred_check
        _
      $region10: #{tpu_custom_call.1} parent=5 // pred_check_branch
        %223 = sbr.rel (%p220) target = $region12
      $region11: #{tpu_custom_call.1} parent=5 // pred_region
        %s224 = ssub.s32 %s16, 1
        // Predicated region
        $region13: #{tpu_custom_call.1} parent=11 // pred_check
          %p225 = pneg %p77
        $region14: #{tpu_custom_call.1} parent=11 // pred_check_branch
          %227 = sbr.rel (%p225) target = $region16
        $region15: #{tpu_custom_call.1} parent=11 // pred_region
          _
        $region16: #{tpu_custom_call.1} parent=11 // pred_fallthru
          _
        // Predicated region
        $region17: #{tpu_custom_call.1} parent=11 // pred_check
          %p228 = pneg %p98
        $region18: #{tpu_custom_call.1} parent=11 // pred_check_branch
          %230 = sbr.rel (%p228) target = $region20
        $region19: #{tpu_custom_call.1} parent=11 // pred_region
          _
        $region20: #{tpu_custom_call.1} parent=11 // pred_fallthru
          _
        // Predicated region
        $region21: #{tpu_custom_call.1} parent=11 // pred_check
          %p231 = pneg %p119
        $region22: #{tpu_custom_call.1} parent=11 // pred_check_branch
          %233 = sbr.rel (%p231) target = $region24
        $region23: #{tpu_custom_call.1} parent=11 // pred_region
          _
        $region24: #{tpu_custom_call.1} parent=11 // pred_fallthru
          _
        // Predicated region
        $region25: #{tpu_custom_call.1} parent=11 // pred_check
          %p234 = pneg %p140
        $region26: #{tpu_custom_call.1} parent=11 // pred_check_branch
          %236 = sbr.rel (%p234) target = $region28
        $region27: #{tpu_custom_call.1} parent=11 // pred_region
          _
        $region28: #{tpu_custom_call.1} parent=11 // pred_fallthru
          _
        // Predicated region
        $region29: #{tpu_custom_call.1} parent=11 // pred_check
          %p237 = pneg %p161
        $region30: #{tpu_custom_call.1} parent=11 // pred_check_branch
          %239 = sbr.rel (%p237) target = $region32
        $region31: #{tpu_custom_call.1} parent=11 // pred_region
          _
        $region32: #{tpu_custom_call.1} parent=11 // pred_fallthru
          _
        // Predicated region
        $region33: #{tpu_custom_call.1} parent=11 // pred_check
          %p240 = pneg %p182
        $region34: #{tpu_custom_call.1} parent=11 // pred_check_branch
          %242 = sbr.rel (%p240) target = $region36
        $region35: #{tpu_custom_call.1} parent=11 // pred_region
          _
        $region36: #{tpu_custom_call.1} parent=11 // pred_fallthru
          _
      $region12: #{tpu_custom_call.1} parent=5 // pred_fallthru
        _
      %p243 = scmp.lt.s32.totalorder %s16, 2
      // Predicated region
      $region37: #{tpu_custom_call.1} parent=5 // pred_check
        %p244 = pneg %p243
      $region38: #{tpu_custom_call.1} parent=5 // pred_check_branch
        %246 = sbr.rel (%p244) target = $region40
      $region39: #{tpu_custom_call.1} parent=5 // pred_region
        // Predicated region
        $region41: #{tpu_custom_call.1} parent=39 // pred_check
          %p247 = pneg %p50
        $region42: #{tpu_custom_call.1} parent=39 // pred_check_branch
          %249 = sbr.rel (%p247) target = $region44
        $region43: #{tpu_custom_call.1} parent=39 // pred_region
          %p250 = scmp.lt.s32.totalorder %s23, 1
          %s251 = scalar_select %p250, %s23, 1
          %p252 = scmp.lt.s32.totalorder %s24, 0
          %s253 = scalar_select %p252, %s24, 0
          %s254 = sadd.s32 %s253, %s251
          %s255 = smul.addr %s254, 4
          %s256 = scalar_lea.vmem %s0, %s255
        $region44: #{tpu_custom_call.1} parent=39 // pred_fallthru
          _
      $region40: #{tpu_custom_call.1} parent=5 // pred_fallthru
        _
      %p257 = scmp.le.s32.totalorder 1, %s16
      %p258 = scmp.lt.s32.totalorder %s16, 3
      %p259 = pnand %p257, %p258
      %p260 = pneg %p259
      // Predicated region
      $region45: #{tpu_custom_call.1} parent=5 // pred_check
        _
      $region46: #{tpu_custom_call.1} parent=5 // pred_check_branch
        %262 = sbr.rel (%p259) target = $region48
      $region47: #{tpu_custom_call.1} parent=5 // pred_region
        %s263 = ssub.s32 %s16, 1
        %p264 = scmp.lt.s32.totalorder %s25, 1
        %s265 = scalar_select %p264, %s25, 1
        %p266 = scmp.lt.s32.totalorder %s26, 0
        %s267 = scalar_select %p266, %s26, 0
        %s268 = sadd.s32 %s267, %s265
        %s269 = smul.addr %s268, 4
        %s270 = scalar_lea.vmem %s0, %s269
        %p271 = pneg %p56
        %p272 = pneg %p53
        %p273 = pneg %p77
        %p274 = pneg %p74
        %p275 = pneg %p98
        %p276 = pneg %p95
        %p277 = pneg %p119
        %p278 = pneg %p116
        %p279 = pneg %p140
        %p280 = pneg %p137
        %p281 = pneg %p161
        %p282 = pneg %p158
        %p283 = pneg %p182
        %p284 = pneg %p179
        %p285 = pneg %p210
        %p286 = pneg %p207
        %s287 = sand.u32 %s197, 1
        %s288 = scalar_lea.sflag [#allocation7], %s287
        %s289 = sand.u32 %s197, 1
        %s290 = smul.addr %s289, 8
        %s291 = scalar_lea.vmem [#allocation6], %s290
        %p292 = scmp.lt.s32.totalorder %s25, 1
        %s293 = scalar_select %p292, %s25, 1
        %p294 = scmp.lt.s32.totalorder %s26, 0
        %s295 = scalar_select %p294, %s26, 0
        %s296 = sadd.s32 %s295, %s293
        %s297 = smul.addr %s296, 4
        %s298 = scalar_lea.vmem %s0, %s297
        %p299 = scmp.eq.s32.totalorder %s26, 0
        // Predicated region
        $region49: #{tpu_custom_call.1} parent=47 // pred_check
          %p300 = pneg %p299
        $region50: #{tpu_custom_call.1} parent=47 // pred_check_branch
          %302 = sbr.rel (%p300) target = $region52
        $region51: #{tpu_custom_call.1} parent=47 // pred_region
          %vm303 = vcmask 27648
          %304 = vst.msk [vmem:[#allocation2] sm:$0xf] %vm303, 0.0
          %vm305 = vcmask 31744
          %306 = vst.msk [vmem:[#allocation3] sm:$0xff] %vm305, 0.0
        $region52: #{tpu_custom_call.1} parent=47 // pred_fallthru
          _
        %v307 = vld [vmem:[%s298] sm:$0xf]
        %309 = vrot.lane.b32.xlu0 %v307, 4
        %v310 = vpop.permute.xlu0 %309
        %vm312 = vcmask 158752
        %313 = vst.msk [vmem:[#allocation2] sm:$0xf] %vm312, %v310
        %v314 = vld [vmem:[#allocation2] sm:$0xf]
        %vm315 = vcmask 125952
        %316 = vst.msk [vmem:[#allocation4] sm:$0xf] %vm315, %v314
        %v317 = vld [vmem:[#allocation2] sm:$0xf]
        %319 = vrot.lane.b32.xlu0 %v317, 126
        %v320 = vpop.permute.xlu0 %319
        %322 = vst.msk [vmem:[#allocation4 + $0x4] sm:$0xf] %vm315, %v320
        %v323 = vld [vmem:[#allocation2] sm:$0xf]
        %325 = vrot.lane.b32.xlu0 %v323, 124
        %v326 = vpop.permute.xlu0 %325
        %328 = vst.msk [vmem:[#allocation4 + $0x8] sm:$0xf] %vm315, %v326
        %v329 = vld [vmem:[%s1] sm:$0xff]
        %v330 = vld [vmem:[#allocation4] sm:$0xff]
        %v331 = vld [vmem:[#allocation4 + $0x8] sm:$0xf]
        %v332 = vld [vmem:[%s2] sm:$0xff]
        %334 = vset.pattern.permute.xlu0 0
        %335 = vperm.xlu0 %334, %v332
        %v336 = vpop.permute.xlu0 %335
        %vm338 = vcmask 97280
        %v340 = vsel %vm338, %v329, 0
        %vm342 = vcmask 1043456
        %v344 = vsel %vm342, %v331, 0
        %346 = vmatprep.subr.mxu0 0.0
        %347 = vmatpush1.msra.mxu0 %v330
        %348 = vmatprep.subr.mxu0 0.0
        %349 = vmatpush1.msra.mxu0 %v344
        %350 = vmatprep.subr.mxu0 0.0
        %351 = vmatpush1.msra.mxu0 0.0
        %352 = vmatprep.subr.mxu0 0.0
        %353 = vmatpush1.msra.mxu0 0.0
        %354 = vmatprep.subr.mxu0 0.0
        %355 = vmatpush1.msra.mxu0 0.0
        %356 = vmatprep.subr.mxu0 0.0
        %357 = vmatpush1.msra.mxu0 0.0
        %358 = vmatprep.subr.mxu0 0.0
        %359 = vmatpush1.msra.mxu0 0.0
        %360 = vmatprep.subr.mxu0 0.0
        %361 = vmatpush1.msra.mxu0 0.0
        %362 = vmatprep.subr.mxu0 0.0
        %363 = vmatpush1.msra.mxu0 0.0
        %364 = vmatprep.subr.mxu0 0.0
        %365 = vmatpush1.msra.mxu0 0.0
        %366 = vmatprep.subr.mxu0 0.0
        %367 = vmatpush1.msra.mxu0 0.0
        %368 = vmatprep.subr.mxu0 0.0
        %369 = vmatpush1.msra.mxu0 0.0
        %370 = vmatprep.subr.mxu0 0.0
        %371 = vmatpush1.msra.mxu0 0.0
        %372 = vmatprep.subr.mxu0 0.0
        %373 = vmatpush1.msra.mxu0 0.0
        %374 = vmatprep.subr.mxu0 0.0
        %375 = vmatpush1.msra.mxu0 0.0
        %376 = vmatprep.subr.mxu0 0.0
        %377 = vmatpush1.msra.mxu0 0.0
        %378 = vmatprep.subr.mxu0 0.0
        %379 = vmatpush1.msra.mxu0 0.0
        %380 = vmatprep.subr.mxu0 0.0
        %381 = vmatpush1.msra.mxu0 0.0
        %382 = vmatprep.subr.mxu0 0.0
        %383 = vmatpush1.msra.mxu0 0.0
        %384 = vmatprep.subr.mxu0 0.0
        %385 = vmatpush1.msra.mxu0 0.0
        %386 = vmatprep.subr.mxu0 0.0
        %387 = vmatpush1.msra.mxu0 0.0
        %388 = vmatprep.subr.mxu0 0.0
        %389 = vmatpush1.msra.mxu0 0.0
        %390 = vmatprep.subr.mxu0 0.0
        %391 = vmatpush1.msra.mxu0 0.0
        %392 = vmatprep.subr.mxu0 0.0
        %393 = vmatpush1.msra.mxu0 0.0
        %394 = vmatprep.subr.mxu0 0.0
        %395 = vmatpush1.msra.mxu0 0.0
        %396 = vmatprep.subr.mxu0 0.0
        %397 = vmatpush1.msra.mxu0 0.0
        %398 = vmatprep.subr.mxu0 0.0
        %399 = vmatpush1.msra.mxu0 0.0
        %400 = vmatprep.subr.mxu0 0.0
        %401 = vmatpush1.msra.mxu0 0.0
        %402 = vmatprep.subr.mxu0 0.0
        %403 = vmatpush1.msra.mxu0 0.0
        %404 = vmatprep.subr.mxu0 0.0
        %405 = vmatpush1.msra.mxu0 0.0
        %406 = vmatprep.subr.mxu0 0.0
        %407 = vmatpush1.msra.mxu0 0.0
        %408 = vmatprep.subr.mxu0 0.0
        %409 = vmatpush1.msra.mxu0 0.0
        %410 = vmatprep.mubr.f32.mxu0 0.0
        %411 = vmatmul.mubr.f32.gmra.mrb[0].mxu0 %v340
        %v412 = vpop.f32.mrb[0].mxu0
        %v413 = vadd.f32 %v336, %v412
        %v414 = vpop.f32.mrb[0].mxu0
        %415 = vdwg.mxu0
        %v416 = vmax.f32 %v413, 0.0
        %418 = vrot.lane.b32.xlu0 %v416, 4
        %v419 = vpop.permute.xlu0 %418
        %vm421 = vcmask 162848
        %422 = vst.msk [vmem:[#allocation3] sm:$0xff] %vm421, %v419
        %v423 = vld [vmem:[#allocation3] sm:$0xff]
        %vm424 = vcmask 130048
        %425 = vst.msk [vmem:[#allocation5] sm:$0xff] %vm424, %v423
        %v426 = vld [vmem:[#allocation3] sm:$0xff]
        %428 = vrot.lane.b32.xlu0 %v426, 126
        %v429 = vpop.permute.xlu0 %428
        %431 = vst.msk [vmem:[#allocation5 + $0x8] sm:$0xff] %vm424, %v429
        %v432 = vld [vmem:[#allocation3] sm:$0xff]
        %434 = vrot.lane.b32.xlu0 %v432, 124
        %v435 = vpop.permute.xlu0 %434
        %437 = vst.msk [vmem:[#allocation5 + $0x10] sm:$0xff] %vm424, %v435
        %v438 = vld [vmem:[%s3] sm:$0xff]
        %v439 = vld [vmem:[#allocation5] sm:$0xff]
        %v440 = vld [vmem:[#allocation5 + $0x8] sm:$0xff]
        %v441 = vld [vmem:[#allocation5 + $0x10] sm:$0xff]
        %v442 = vld [vmem:[%s4] sm:$0xff]
        %444 = vset.pattern.permute.xlu0 0
        %445 = vperm.xlu0 %444, %v442
        %v446 = vpop.permute.xlu0 %445
        %vm448 = vcmask 195584
        %v450 = vsel %vm448, %v438, 0
        %452 = vmatprep.subr.mxu0 0.0
        %453 = vmatpush1.msra.mxu0 %v439
        %454 = vmatprep.subr.mxu0 0.0
        %455 = vmatpush1.msra.mxu0 %v440
        %456 = vmatprep.subr.mxu0 0.0
        %457 = vmatpush1.msra.mxu0 %v441
        %458 = vmatprep.subr.mxu0 0.0
        %459 = vmatpush1.msra.mxu0 0.0
        %460 = vmatprep.subr.mxu0 0.0
        %461 = vmatpush1.msra.mxu0 0.0
        %462 = vmatprep.subr.mxu0 0.0
        %463 = vmatpush1.msra.mxu0 0.0
        %464 = vmatprep.subr.mxu0 0.0
        %465 = vmatpush1.msra.mxu0 0.0
        %466 = vmatprep.subr.mxu0 0.0
        %467 = vmatpush1.msra.mxu0 0.0
        %468 = vmatprep.subr.mxu0 0.0
        %469 = vmatpush1.msra.mxu0 0.0
        %470 = vmatprep.subr.mxu0 0.0
        %471 = vmatpush1.msra.mxu0 0.0
        %472 = vmatprep.subr.mxu0 0.0
        %473 = vmatpush1.msra.mxu0 0.0
        %474 = vmatprep.subr.mxu0 0.0
        %475 = vmatpush1.msra.mxu0 0.0
        %476 = vmatprep.subr.mxu0 0.0
        %477 = vmatpush1.msra.mxu0 0.0
        %478 = vmatprep.subr.mxu0 0.0
        %479 = vmatpush1.msra.mxu0 0.0
        %480 = vmatprep.subr.mxu0 0.0
        %481 = vmatpush1.msra.mxu0 0.0
        %482 = vmatprep.subr.mxu0 0.0
        %483 = vmatpush1.msra.mxu0 0.0
        %484 = vmatprep.subr.mxu0 0.0
        %485 = vmatpush1.msra.mxu0 0.0
        %486 = vmatprep.subr.mxu0 0.0
        %487 = vmatpush1.msra.mxu0 0.0
        %488 = vmatprep.subr.mxu0 0.0
        %489 = vmatpush1.msra.mxu0 0.0
        %490 = vmatprep.subr.mxu0 0.0
        %491 = vmatpush1.msra.mxu0 0.0
        %492 = vmatprep.subr.mxu0 0.0
        %493 = vmatpush1.msra.mxu0 0.0
        %494 = vmatprep.subr.mxu0 0.0
        %495 = vmatpush1.msra.mxu0 0.0
        %496 = vmatprep.subr.mxu0 0.0
        %497 = vmatpush1.msra.mxu0 0.0
        %498 = vmatprep.subr.mxu0 0.0
        %499 = vmatpush1.msra.mxu0 0.0
        %500 = vmatprep.subr.mxu0 0.0
        %501 = vmatpush1.msra.mxu0 0.0
        %502 = vmatprep.subr.mxu0 0.0
        %503 = vmatpush1.msra.mxu0 0.0
        %504 = vmatprep.subr.mxu0 0.0
        %505 = vmatpush1.msra.mxu0 0.0
        %506 = vmatprep.subr.mxu0 0.0
        %507 = vmatpush1.msra.mxu0 0.0
        %508 = vmatprep.subr.mxu0 0.0
        %509 = vmatpush1.msra.mxu0 0.0
        %510 = vmatprep.subr.mxu0 0.0
        %511 = vmatpush1.msra.mxu0 0.0
        %512 = vmatprep.subr.mxu0 0.0
        %513 = vmatpush1.msra.mxu0 0.0
        %514 = vmatprep.subr.mxu0 0.0
        %515 = vmatpush1.msra.mxu0 0.0
        %516 = vmatprep.mubr.f32.mxu0 0.0
        %517 = vmatmul.mubr.f32.gmra.mrb[0].mxu0 %v450
        %v518 = vpop.f32.mrb[0].mxu0
        %v519 = vadd.f32 %v446, %v518
        %v520 = vpop.f32.mrb[0].mxu0
        %521 = vdwg.mxu0
        %v522 = vmax.f32 %v519, 0.0
        %v523 = vld [vmem:[%s5] sm:$0xff]
        %v524 = vld [vmem:[%s6] sm:$0xff]
        %526 = vset.pattern.permute.xlu0 0
        %527 = vperm.xlu0 %526, %v524
        %v528 = vpop.permute.xlu0 %527
        %vm530 = vcmask 31744
        %v532 = vsel %vm530, %v523, 0
        %v534 = vsel %vm342, %v307, 0
        %536 = vmatprep.subr.mxu0 0.0
        %537 = vmatpush1.msra.mxu0 %v534
        %538 = vmatprep.subr.mxu0 0.0
        %539 = vmatpush1.msra.mxu0 0.0
        %540 = vmatprep.subr.mxu0 0.0
        %541 = vmatpush1.msra.mxu0 0.0
        %542 = vmatprep.subr.mxu0 0.0
        %543 = vmatpush1.msra.mxu0 0.0
        %544 = vmatprep.subr.mxu0 0.0
        %545 = vmatpush1.msra.mxu0 0.0
        %546 = vmatprep.subr.mxu0 0.0
        %547 = vmatpush1.msra.mxu0 0.0
        %548 = vmatprep.subr.mxu0 0.0
        %549 = vmatpush1.msra.mxu0 0.0
        %550 = vmatprep.subr.mxu0 0.0
        %551 = vmatpush1.msra.mxu0 0.0
        %552 = vmatprep.subr.mxu0 0.0
        %553 = vmatpush1.msra.mxu0 0.0
        %554 = vmatprep.subr.mxu0 0.0
        %555 = vmatpush1.msra.mxu0 0.0
        %556 = vmatprep.subr.mxu0 0.0
        %557 = vmatpush1.msra.mxu0 0.0
        %558 = vmatprep.subr.mxu0 0.0
        %559 = vmatpush1.msra.mxu0 0.0
        %560 = vmatprep.subr.mxu0 0.0
        %561 = vmatpush1.msra.mxu0 0.0
        %562 = vmatprep.subr.mxu0 0.0
        %563 = vmatpush1.msra.mxu0 0.0
        %564 = vmatprep.subr.mxu0 0.0
        %565 = vmatpush1.msra.mxu0 0.0
        %566 = vmatprep.subr.mxu0 0.0
        %567 = vmatpush1.msra.mxu0 0.0
        %568 = vmatprep.subr.mxu0 0.0
        %569 = vmatpush1.msra.mxu0 0.0
        %570 = vmatprep.subr.mxu0 0.0
        %571 = vmatpush1.msra.mxu0 0.0
        %572 = vmatprep.subr.mxu0 0.0
        %573 = vmatpush1.msra.mxu0 0.0
        %574 = vmatprep.subr.mxu0 0.0
        %575 = vmatpush1.msra.mxu0 0.0
        %576 = vmatprep.subr.mxu0 0.0
        %577 = vmatpush1.msra.mxu0 0.0
        %578 = vmatprep.subr.mxu0 0.0
        %579 = vmatpush1.msra.mxu0 0.0
        %580 = vmatprep.subr.mxu0 0.0
        %581 = vmatpush1.msra.mxu0 0.0
        %582 = vmatprep.subr.mxu0 0.0
        %583 = vmatpush1.msra.mxu0 0.0
        %584 = vmatprep.subr.mxu0 0.0
        %585 = vmatpush1.msra.mxu0 0.0
        %586 = vmatprep.subr.mxu0 0.0
        %587 = vmatpush1.msra.mxu0 0.0
        %588 = vmatprep.subr.mxu0 0.0
        %589 = vmatpush1.msra.mxu0 0.0
        %590 = vmatprep.subr.mxu0 0.0
        %591 = vmatpush1.msra.mxu0 0.0
        %592 = vmatprep.subr.mxu0 0.0
        %593 = vmatpush1.msra.mxu0 0.0
        %594 = vmatprep.subr.mxu0 0.0
        %595 = vmatpush1.msra.mxu0 0.0
        %596 = vmatprep.subr.mxu0 0.0
        %597 = vmatpush1.msra.mxu0 0.0
        %598 = vmatprep.subr.mxu0 0.0
        %599 = vmatpush1.msra.mxu0 0.0
        %600 = vmatprep.mubr.f32.mxu0 0.0
        %601 = vmatmul.mubr.f32.gmra.mrb[0].mxu0 %v532
        %v602 = vpop.f32.mrb[0].mxu0
        %v603 = vadd.f32 %v528, %v602
        %v604 = vpop.f32.mrb[0].mxu0
        %605 = vdwg.mxu0
        %v606 = vadd.f32 %v522, %v603
        %v607 = vmax.f32 %v606, 0.0
        %608 = vst.msk [vmem:[%s291] sm:$0xff] %vm424, %v607
        %v609 = vld [vmem:[#allocation2] sm:$0xf]
        %611 = vrot.lane.b32.xlu0 %v609, 112
        %v612 = vpop.permute.xlu0 %611
        %vm614 = vcmask 27648
        %615 = vst.msk [vmem:[#allocation2] sm:$0xf] %vm614, %v612
        %v616 = vld [vmem:[#allocation3] sm:$0xff]
        %618 = vrot.lane.b32.xlu0 %v616, 112
        %v619 = vpop.permute.xlu0 %618
        %621 = vst.msk [vmem:[#allocation3] sm:$0xff] %vm530, %v619
        %s622 = sand.u32 %s197, 1
        %s623 = scalar_lea.sflag [#allocation7], %s622
        %s624 = sand.u32 %s197, 1
        %s625 = smul.addr %s624, 8
        %s626 = scalar_lea.vmem [#allocation6], %s625
        // Predicated region
        $region53: #{tpu_custom_call.1} parent=47 // pred_check
          %p627 = pneg %p207
        $region54: #{tpu_custom_call.1} parent=47 // pred_check_branch
          %629 = sbr.rel (%p627) target = $region56
        $region55: #{tpu_custom_call.1} parent=47 // pred_region
          %s631 = ssub.s32 128, 128
          %632 = vsyncadd %s623, %s631
          %s633 = sadd.s32 %s26, %s25
          %s634 = smul.addr %s633, 128
          %s635 = scalar_lea.hbm %s7, %s634
          %s637 = sshll.u32 %s626, 4
          %s638 = int_to_ptr.vmem [resolvable:$true] %s637
          %640 = dma.vmem_to_hbm [thread:$0]  %s638, 128, %s635, %s623
        $region56: #{tpu_custom_call.1} parent=47 // pred_fallthru
          _
      $region48: #{tpu_custom_call.1} parent=5 // pred_fallthru
        _
      %p641 = scmp.le.s32.totalorder 2, %s16
      // Predicated region
      $region57: #{tpu_custom_call.1} parent=5 // pred_check
        %p642 = pneg %p641
      $region58: #{tpu_custom_call.1} parent=5 // pred_check_branch
        %644 = sbr.rel (%p642) target = $region60
      $region59: #{tpu_custom_call.1} parent=5 // pred_region
        %s645 = ssub.s32 %s16, 2
        // Predicated region
        $region61: #{tpu_custom_call.1} parent=59 // pred_check
          %p646 = pneg %p213
        $region62: #{tpu_custom_call.1} parent=59 // pred_check_branch
          %648 = sbr.rel (%p646) target = $region64
        $region63: #{tpu_custom_call.1} parent=59 // pred_region
          %s649 = sand.u32 %s198, 1
          %s650 = scalar_lea.sflag [#allocation7], %s649
          %s651 = sand.u32 %s198, 1
          %s652 = smul.addr %s651, 8
          %s653 = scalar_lea.vmem [#allocation6], %s652
          %654 = dma.done %s650, 128
        $region64: #{tpu_custom_call.1} parent=59 // pred_fallthru
          _
      $region60: #{tpu_custom_call.1} parent=5 // pred_fallthru
        _
    $region6: #{tpu_custom_call.1} parent=1 // loop_footer
      %s20 = sadd.s32 1, %s16
    $region7: #{tpu_custom_call.1} parent=1 // loop_footer_branch
      %15 = sbr.rel target = $region3
    $region8: #{tpu_custom_call.1} parent=1 // loop_exit
      _
    %655 = vsyncpa [#allocation7], 1
    %s656 = scalar_lea.sflag [#allocation7], 1
    %657 = vsyncpa %s656, 1

</llo_original>
